<compile_context>
chip_gen: v7x
topology: tpu7x:2x2x1
jax: 0.10.0
libtpu: 0.0.40
codegen_flags: <defaults>
</compile_context>

<pallas_src>
import functools

import jax
import jax.numpy as jnp
from jax import lax
from jax.experimental import pallas as pl
from jax.experimental.pallas import tpu as pltpu


def ln_kernel(x_ref, alpha_ref, beta_ref, o_ref, *, epsilon):
    # Whole (small) array resident in VMEM. Reduce over axis 0 (sublane axis),
    # broadcast over the feature/lane axis, then fused scale/shift affine.
    x = x_ref[...].astype(jnp.float32)

    mean = jnp.mean(x, axis=0, keepdims=True)                # [1, F]
    var = jnp.mean((x - mean) ** 2, axis=0, keepdims=True)   # [1, F], two-pass

    inv_std = lax.rsqrt(var + epsilon)                       # one EUP op

    alpha = alpha_ref[...].astype(jnp.float32)               # [1, F]
    beta = beta_ref[...].astype(jnp.float32)                 # [1, F]

    # Fold affine into per-feature scale/shift (computed on [1,F] rows):
    #   (x - mean) * inv_std * alpha + beta == x*scale + shift
    scale = inv_std * alpha
    shift = beta - mean * scale

    y = x * scale + shift
    o_ref[...] = y.astype(o_ref.dtype)


def ln_forward(x, alpha, beta, epsilon=1e-5):
    n, f = x.shape
    kernel = functools.partial(ln_kernel, epsilon=epsilon)
    # Gridless call: whole arrays placed in VMEM, no pipeline machinery, no
    # wrapper-side pad/concat/slice HLOs.
    return pl.pallas_call(
        kernel,
        out_shape=jax.ShapeDtypeStruct((n, f), x.dtype),
        in_specs=[
            pl.BlockSpec(memory_space=pltpu.MemorySpace.VMEM),
            pl.BlockSpec(memory_space=pltpu.MemorySpace.VMEM),
            pl.BlockSpec(memory_space=pltpu.MemorySpace.VMEM),
        ],
        out_specs=pl.BlockSpec(memory_space=pltpu.MemorySpace.VMEM),
    )(x, alpha, beta)


def ln_reference(x, alpha, beta, epsilon=1e-5):
    mean = jnp.mean(x, axis=0, keepdims=True)
    var = jnp.mean((x - mean) ** 2, axis=0, keepdims=True)
    std = jnp.sqrt(var + epsilon)
    return (x - mean) / std * alpha + beta


if __name__ == "__main__":
    # Parameters initialized exactly as the nn.Module does:
    # alpha = ones([1, 100]), beta = zeros([1, 100]).
    F_DIM = 100
    N = 8

    alpha = jnp.ones((1, F_DIM), dtype=jnp.float32)
    beta = jnp.zeros((1, F_DIM), dtype=jnp.float32)

    key = jax.random.PRNGKey(0)
    x = jax.random.normal(key, (N, F_DIM), dtype=jnp.float32)

    out = ln_forward(x, alpha, beta)
    out = jax.block_until_ready(out)

    ref = ln_reference(x, alpha, beta)
    assert out.shape == (N, F_DIM)
    assert jnp.allclose(out, ref, atol=1e-5, rtol=1e-5)

    print("KERNEL_OK")
</pallas_src>

<mosaic_0001>
module attributes {stable_mosaic.version = 11 : i64} {
  func.func @ln_kernel(%arg0: memref<8x100xf32, #tpu.memory_space<vmem>>, %arg1: memref<1x100xf32, #tpu.memory_space<vmem>>, %arg2: memref<1x100xf32, #tpu.memory_space<vmem>>, %arg3: memref<8x100xf32, #tpu.memory_space<vmem>>) attributes {dimension_semantics = [], scalar_prefetch = 0 : i64, scratch_operands = 0 : i64, tpu.core_type = #tpu.core_type<tc>} {
    %c0 = arith.constant 0 : index
    %c0_0 = arith.constant 0 : index
    %0 = vector.load %arg0[%c0, %c0_0] : memref<8x100xf32, #tpu.memory_space<vmem>>, vector<8x100xf32>
    %cst = arith.constant dense<0.000000e+00> : vector<100xf32>
    %1 = vector.multi_reduction <add>, %0, %cst [0] : vector<8x100xf32> to vector<100xf32>
    %2 = vector.shape_cast %1 : vector<100xf32> to vector<1x100xf32>
    %cst_1 = arith.constant 8.000000e+00 : f32
    %3 = vector.broadcast %cst_1 : f32 to vector<1x100xf32>
    %4 = arith.divf %2, %3 : vector<1x100xf32>
    %5 = vector.broadcast %4 : vector<1x100xf32> to vector<8x100xf32>
    %6 = arith.subf %0, %5 : vector<8x100xf32>
    %7 = arith.mulf %6, %6 : vector<8x100xf32>
    %cst_2 = arith.constant dense<0.000000e+00> : vector<100xf32>
    %8 = vector.multi_reduction <add>, %7, %cst_2 [0] : vector<8x100xf32> to vector<100xf32>
    %9 = vector.shape_cast %8 : vector<100xf32> to vector<1x100xf32>
    %cst_3 = arith.constant 8.000000e+00 : f32
    %10 = vector.broadcast %cst_3 : f32 to vector<1x100xf32>
    %11 = arith.divf %9, %10 : vector<1x100xf32>
    %cst_4 = arith.constant 9.99999974E-6 : f32
    %12 = vector.broadcast %cst_4 : f32 to vector<1x100xf32>
    %13 = arith.addf %11, %12 : vector<1x100xf32>
    %14 = math.rsqrt %13 : vector<1x100xf32>
    %c0_5 = arith.constant 0 : index
    %c0_6 = arith.constant 0 : index
    %15 = vector.load %arg1[%c0_5, %c0_6] : memref<1x100xf32, #tpu.memory_space<vmem>>, vector<1x100xf32>
    %c0_7 = arith.constant 0 : index
    %c0_8 = arith.constant 0 : index
    %16 = vector.load %arg2[%c0_7, %c0_8] : memref<1x100xf32, #tpu.memory_space<vmem>>, vector<1x100xf32>
    %17 = arith.mulf %14, %15 : vector<1x100xf32>
    %18 = arith.mulf %4, %17 : vector<1x100xf32>
    %19 = arith.subf %16, %18 : vector<1x100xf32>
    %20 = vector.broadcast %17 : vector<1x100xf32> to vector<8x100xf32>
    %21 = arith.mulf %0, %20 : vector<8x100xf32>
    %22 = vector.broadcast %19 : vector<1x100xf32> to vector<8x100xf32>
    %23 = arith.addf %21, %22 : vector<8x100xf32>
    %c0_9 = arith.constant 0 : index
    %c0_10 = arith.constant 0 : index
    %24 = vector.load %arg3[%c0_9, %c0_10] : memref<8x100xf32, #tpu.memory_space<vmem>>, vector<8x100xf32>
    tpu.vector_store %arg3[%c0_9, %c0_10], %23 {strides = array<i32>} : memref<8x100xf32, #tpu.memory_space<vmem>>, vector<8x100xf32>,
    return
  }
}

</mosaic_0001>

<llo_original>
// kernel: tpu_custom_call.1
$region0: #{tpu_custom_call.1}
  #allocation0 [shape = 'u32[]', space=smem, size = 0x4, offset = 0x4, fixed_abs, tag = 'smem constant byte address 0x4 - core index']
  #allocation1 [shape = 'u32[144,128]{1,0:T(1,128)}', space=vmem, size = 0x12000, scoped, tag = 'internal scratch']
  %s0 = inlined_call_operand.hbm [shape: f32[8,100], index: 0, kind: input, shape index: {}]
  %s1 = inlined_call_operand.vmem [shape: f32[1,100], index: 1, kind: input, shape index: {}]
  %s2 = inlined_call_operand.vmem [shape: f32[1,100], index: 2, kind: input, shape index: {}]
  %s3 = inlined_call_operand.hbm [shape: f32[8,100], index: 3, kind: output, shape index: {}]
  %s4 = sld [smem:[#allocation0]]
  $region26: #{tpu_custom_call.1} parent=0
    _
  %s6 = ssub.s32 1, %s4
  %s7 = scalar_select 0, %s6, %s4
  $region1: #{tpu_custom_call.1} parent=0
    #allocation2 [shape = 'u8[4096]{0}', space=vmem, size = 0x1000, scoped, tag = 'input window, operand 0, single buffered']
    #allocation3 [shape = 's32[1]{0}', space=sflag, size = 0x4, scoped, tag = 'scoped memory for tpu_custom_call.1']
    #allocation4 [shape = 's32[1]{0}', space=sflag, size = 0x4, scoped, tag = 'scoped memory for tpu_custom_call.1']
    #allocation5 [shape = 'u8[4096]{0}', space=vmem, size = 0x1000, scoped, tag = 'output window, operand 0, single buffered']
    %8 = vsyncpa [#allocation3], 0
    %9 = vsyncpa [#allocation4], 0
    // Predicated region
    $region2: #{tpu_custom_call.1} parent=1 // pred_check
      _
    $region3: #{tpu_custom_call.1} parent=1 // pred_check_branch
      %11 = sbr.rel (0) target = $region5
    $region4: #{tpu_custom_call.1} parent=1 // pred_region
      %s13 = ssub.s32 128, 128
      %14 = vsyncadd [#allocation3], %s13
      %s16 = sshll.u32 [#allocation2], 4
      %s17 = int_to_ptr.vmem [resolvable:$true] %s16
      %19 = dma.hbm_to_vmem [thread:$0]  %s0, 128, %s17, [#allocation3]
    $region5: #{tpu_custom_call.1} parent=1 // pred_fallthru
      _
    // Predicated region
    $region6: #{tpu_custom_call.1} parent=1 // pred_check
      _
    $region7: #{tpu_custom_call.1} parent=1 // pred_check_branch
      %21 = sbr.rel (0) target = $region9
    $region8: #{tpu_custom_call.1} parent=1 // pred_region
      _
    $region9: #{tpu_custom_call.1} parent=1 // pred_fallthru
      _
    // Predicated region
    $region10: #{tpu_custom_call.1} parent=1 // pred_check
      _
    $region11: #{tpu_custom_call.1} parent=1 // pred_check_branch
      %23 = sbr.rel (0) target = $region13
    $region12: #{tpu_custom_call.1} parent=1 // pred_region
      _
    $region13: #{tpu_custom_call.1} parent=1 // pred_fallthru
      _
    // Predicated region
    $region14: #{tpu_custom_call.1} parent=1 // pred_check
      _
    $region15: #{tpu_custom_call.1} parent=1 // pred_check_branch
      %25 = sbr.rel (0) target = $region17
    $region16: #{tpu_custom_call.1} parent=1 // pred_region
      %26 = dma.done [#allocation3], 128
    $region17: #{tpu_custom_call.1} parent=1 // pred_fallthru
      _
    %v27 = vld [vmem:[#allocation2] sm:$0xff]
    %vm28 = vcmask 818176
    %v29 = vsel %vm28, %v27, 0.0
    %v30 = vrot.slane %v29, 4
    %v31 = vadd.f32 %v29, %v30
    %v32 = vrot.slane %v31, 2
    %v33 = vadd.f32 %v31, %v32
    %v34 = vrot.slane %v33, 1
    %v35 = vadd.f32 %v33, %v34
    %v36 = vrcp.pop 8.0
    %v37 = vmul.f32 %v35, %v36
    %v38 = vsub.f32 %v27, %v37
    %v39 = vmul.f32 %v38, %v38
    %v40 = vsel %vm28, %v39, 0.0
    %v41 = vrot.slane %v40, 4
    %v42 = vadd.f32 %v40, %v41
    %v43 = vrot.slane %v42, 2
    %v44 = vadd.f32 %v42, %v43
    %v45 = vrot.slane %v44, 1
    %v46 = vadd.f32 %v44, %v45
    %v47 = vmul.f32 %v46, %v36
    %v48 = vadd.f32 %v47, 1e-05
    %v49 = vrsqrt.pop %v48
    %v50 = vld [vmem:[%s1] sm:$0x1]
    %v51 = vld [vmem:[%s2] sm:$0x1]
    %v52 = vmul.f32 %v49, %v50
    %v53 = vmul.f32 %v37, %v52
    %v54 = vsub.f32 %v51, %v53
    %v55 = vlaneseq
    %v56 = vshrl.u32 %v55, 7
    %v57 = vsub.s32 0, %v56
    %v58 = vrot.slane %v52, %v57
    %v59 = vmul.f32 %v27, %v58
    %v61 = vlaneseq
    %v62 = vshrl.u32 %v61, 7
    %v63 = vsub.s32 0, %v62
    %v64 = vrot.slane %v54, %v63
    %v66 = vadd.f32 %v59, %v64
    %67 = vst.msk [vmem:[#allocation5] sm:$0xff] %vm28, %v66
    // Predicated region
    $region18: #{tpu_custom_call.1} parent=1 // pred_check
      _
    $region19: #{tpu_custom_call.1} parent=1 // pred_check_branch
      %69 = sbr.rel (0) target = $region21
    $region20: #{tpu_custom_call.1} parent=1 // pred_region
      %s71 = ssub.s32 128, 128
      %72 = vsyncadd [#allocation4], %s71
      %s74 = sshll.u32 [#allocation5], 4
      %s75 = int_to_ptr.vmem [resolvable:$true] %s74
      %77 = dma.vmem_to_hbm [thread:$0]  %s75, 128, %s3, [#allocation4]
    $region21: #{tpu_custom_call.1} parent=1 // pred_fallthru
      _
    // Predicated region
    $region22: #{tpu_custom_call.1} parent=1 // pred_check
      _
    $region23: #{tpu_custom_call.1} parent=1 // pred_check_branch
      %79 = sbr.rel (0) target = $region25
    $region24: #{tpu_custom_call.1} parent=1 // pred_region
      %80 = dma.done [#allocation4], 128
    $region25: #{tpu_custom_call.1} parent=1 // pred_fallthru
      _
    %81 = vsyncpa [#allocation3], 1
    %82 = vsyncpa [#allocation4], 1

</llo_original>
